<compile_context>
chip_gen: v7x
topology: tpu7x:2x2x1
jax: 0.10.0
libtpu: 0.0.40
codegen_flags: <defaults>
</compile_context>

<pallas_src>
import functools

import jax
import jax.numpy as jnp
from jax.experimental import pallas as pl
from jax.experimental.pallas import tpu as pltpu  # noqa: F401  (TPU backend assumed)

LANE = 128  # pad feature/class dims to this for lane-dense, MXU-aligned tiles


def _round_up(n, m):
    return ((n + m - 1) // m) * m


def _full_spec(shape):
    # block_shape == full array shape -> satisfies the (8,128) rule via the
    # "equal to full dims" clause; grid=() so index_map takes no args.
    return pl.BlockSpec(shape, lambda: (0,) * len(shape))


# ----------------------------------------------------------------------------
# Fused kernel: all hidden layers + final dense + log_softmax
# ----------------------------------------------------------------------------

def dense_fused_kernel(*refs, num_hidden):
    """refs = (adj, x, W0, b0, ..., W_H, b_H, W_last, b_last, out)."""
    adj_ref, x_ref = refs[0], refs[1]
    o_ref = refs[-1]
    wb = refs[2:-1]  # 2 * (num_hidden + 1) weight/bias refs

    adj = adj_ref[...].astype(jnp.bfloat16)   # cast once, reused every layer
    h = x_ref[...]                            # f32 activations

    for i in range(num_hidden):
        w = wb[2 * i][...]                    # bf16 (Fin_pad, Fout_pad)
        b = wb[2 * i + 1][...]                # f32  (1, Fout_pad)
        xw = jnp.dot(h.astype(jnp.bfloat16), w,
                     preferred_element_type=jnp.float32)
        z = jnp.dot(adj, xw.astype(jnp.bfloat16),
                    preferred_element_type=jnp.float32) + b
        h = jnp.maximum(z, 0.0)
        # TODO(synk): training-mode dropout via pltpu.prng_* (eval mode == identity)

    w = wb[2 * num_hidden][...]
    b = wb[2 * num_hidden + 1][...]           # padded class cols carry -1e30 bias
    logits = jnp.dot(h.astype(jnp.bfloat16), w,
                     preferred_element_type=jnp.float32) + b

    # numerically stable log_softmax over the (padded) class axis;
    # padded classes contribute exp(~-1e30) ~= 0 so real-class values are exact.
    m = jnp.max(logits, axis=1, keepdims=True)
    s = logits - m
    lse = jnp.log(jnp.sum(jnp.exp(s), axis=1, keepdims=True))
    o_ref[...] = (s - lse).astype(o_ref.dtype)


# ----------------------------------------------------------------------------
# Model
# ----------------------------------------------------------------------------

class DensePallas:
    """Mirror of the PyTorch Dense module (eval mode), fused into one kernel."""

    def __init__(self, nfeat, nhid_list, nclass, dropout, key):
        self.nfeat = nfeat
        self.nhid_list = list(nhid_list)
        self.nclass = nclass
        self.dropout = dropout  # eval mode: identity

        dims = [nfeat] + self.nhid_list + [nclass]
        pdims = [_round_up(d, LANE) for d in dims]

        self.params = []
        for i in range(1, len(dims)):
            f_in, f_out = dims[i - 1], dims[i]
            p_in, p_out = pdims[i - 1], pdims[i]
            key, wk = jax.random.split(key)
            # deterministic glorot-ish init on the real sub-block, zero padding
            w = jax.random.normal(wk, (f_in, f_out), jnp.float32) / jnp.sqrt(f_in)
            w_pad = jnp.zeros((p_in, p_out), jnp.float32).at[:f_in, :f_out].set(w)
            if i == len(dims) - 1:
                # final layer: huge negative bias on padded class columns so they
                # vanish under log_softmax
                b_pad = jnp.full((1, p_out), -1e30, jnp.float32).at[:, :f_out].set(0.0)
            else:
                b_pad = jnp.zeros((1, p_out), jnp.float32)
            self.params.append((w_pad.astype(jnp.bfloat16), b_pad))

    @functools.partial(jax.jit, static_argnums=0)
    def __call__(self, x, adj):
        n, f = x.shape
        n_pad = _round_up(n, 8)
        f_pad = _round_up(f, LANE)
        c_pad = self.params[-1][0].shape[1]

        # pad nodes (sublanes) and input features (lanes); padded rows/cols are
        # zero so they never influence the real outputs.
        x_p = jnp.zeros((n_pad, f_pad), jnp.float32).at[:n, :f].set(x)
        adj_p = jnp.zeros((n_pad, n_pad), jnp.float32).at[:n, :n].set(adj)

        args = [adj_p, x_p]
        in_specs = [_full_spec(adj_p.shape), _full_spec(x_p.shape)]
        for w, b in self.params:
            args += [w, b]
            in_specs += [_full_spec(w.shape), _full_spec(b.shape)]

        kernel = functools.partial(dense_fused_kernel,
                                   num_hidden=len(self.nhid_list))
        out = pl.pallas_call(
            kernel,
            out_shape=jax.ShapeDtypeStruct((n_pad, c_pad), jnp.float32),
            grid=(),
            in_specs=in_specs,
            out_specs=_full_spec((n_pad, c_pad)),
        )(*args)
        # drop node padding and padded class columns
        return out[:n, :self.nclass]


# ----------------------------------------------------------------------------
# Main
# ----------------------------------------------------------------------------

if __name__ == "__main__":
    key = jax.random.PRNGKey(0)
    k_x, k_adj, k_param = jax.random.split(key, 3)

    N = 16          # number of graph nodes
    NFEAT = 32
    NHID_LIST = [32, 16]
    NCLASS = 8

    x = jax.random.normal(k_x, (N, NFEAT), jnp.float32)
    # symmetric, row-normalized-ish dense adjacency
    a = jax.random.uniform(k_adj, (N, N), jnp.float32)
    adj = (a + a.T) * 0.5
    adj = adj / jnp.sum(adj, axis=1, keepdims=True)

    model = DensePallas(NFEAT, NHID_LIST, NCLASS, dropout=0.5, key=k_param)
    out = model(x, adj)
    out = jax.block_until_ready(out)

    assert out.shape == (N, NCLASS)
    # log_softmax rows should sum (in prob space) to 1
    assert jnp.allclose(jnp.sum(jnp.exp(out), axis=1), 1.0, atol=1e-4)

    print("KERNEL_OK")
</pallas_src>

<mosaic_0001>
module attributes {stable_mosaic.version = 11 : i64} {
  func.func @dense_fused_kernel(%arg0: memref<16x16xf32, #tpu.memory_space<vmem>>, %arg1: memref<16x128xf32, #tpu.memory_space<vmem>>, %arg2: memref<128x128xbf16, #tpu.memory_space<vmem>>, %arg3: memref<1x128xf32, #tpu.memory_space<vmem>>, %arg4: memref<128x128xbf16, #tpu.memory_space<vmem>>, %arg5: memref<1x128xf32, #tpu.memory_space<vmem>>, %arg6: memref<128x128xbf16, #tpu.memory_space<vmem>>, %arg7: memref<1x128xf32, #tpu.memory_space<vmem>>, %arg8: memref<16x128xf32, #tpu.memory_space<vmem>>) attributes {dimension_semantics = [], scalar_prefetch = 0 : i64, scratch_operands = 0 : i64, tpu.core_type = #tpu.core_type<tc>} {
    %c0 = arith.constant 0 : index
    %c0_0 = arith.constant 0 : index
    %0 = vector.load %arg0[%c0, %c0_0] : memref<16x16xf32, #tpu.memory_space<vmem>>, vector<16x16xf32>
    %1 = arith.truncf %0 : vector<16x16xf32> to vector<16x16xbf16>
    %c0_1 = arith.constant 0 : index
    %c0_2 = arith.constant 0 : index
    %2 = vector.load %arg1[%c0_1, %c0_2] : memref<16x128xf32, #tpu.memory_space<vmem>>, vector<16x128xf32>
    %c0_3 = arith.constant 0 : index
    %c0_4 = arith.constant 0 : index
    %3 = vector.load %arg2[%c0_3, %c0_4] : memref<128x128xbf16, #tpu.memory_space<vmem>>, vector<128x128xbf16>
    %c0_5 = arith.constant 0 : index
    %c0_6 = arith.constant 0 : index
    %4 = vector.load %arg3[%c0_5, %c0_6] : memref<1x128xf32, #tpu.memory_space<vmem>>, vector<1x128xf32>
    %5 = arith.truncf %2 : vector<16x128xf32> to vector<16x128xbf16>
    %cst = arith.constant dense<0.000000e+00> : vector<16x128xf32>
    %6 = tpu.matmul %5, %3, %cst {dimension_numbers = #tpu.dot_dimension_numbers<[1], [0], [0], [1], [0, 0, 1, 1], [], []>} : vector<16x128xbf16>, vector<128x128xbf16>, vector<16x128xf32> -> vector<16x128xf32>
    %7 = arith.truncf %6 : vector<16x128xf32> to vector<16x128xbf16>
    %cst_7 = arith.constant dense<0.000000e+00> : vector<16x128xf32>
    %8 = tpu.matmul %1, %7, %cst_7 {dimension_numbers = #tpu.dot_dimension_numbers<[1], [0], [0], [1], [0, 0, 1, 1], [], []>} : vector<16x16xbf16>, vector<16x128xbf16>, vector<16x128xf32> -> vector<16x128xf32>
    %9 = vector.broadcast %4 : vector<1x128xf32> to vector<16x128xf32>
    %10 = arith.addf %8, %9 : vector<16x128xf32>
    %cst_8 = arith.constant 0.000000e+00 : f32
    %11 = vector.broadcast %cst_8 : f32 to vector<16x128xf32>
    %12 = arith.maximumf %10, %11 : vector<16x128xf32>
    %c0_9 = arith.constant 0 : index
    %c0_10 = arith.constant 0 : index
    %13 = vector.load %arg4[%c0_9, %c0_10] : memref<128x128xbf16, #tpu.memory_space<vmem>>, vector<128x128xbf16>
    %c0_11 = arith.constant 0 : index
    %c0_12 = arith.constant 0 : index
    %14 = vector.load %arg5[%c0_11, %c0_12] : memref<1x128xf32, #tpu.memory_space<vmem>>, vector<1x128xf32>
    %15 = arith.truncf %12 : vector<16x128xf32> to vector<16x128xbf16>
    %cst_13 = arith.constant dense<0.000000e+00> : vector<16x128xf32>
    %16 = tpu.matmul %15, %13, %cst_13 {dimension_numbers = #tpu.dot_dimension_numbers<[1], [0], [0], [1], [0, 0, 1, 1], [], []>} : vector<16x128xbf16>, vector<128x128xbf16>, vector<16x128xf32> -> vector<16x128xf32>
    %17 = arith.truncf %16 : vector<16x128xf32> to vector<16x128xbf16>
    %cst_14 = arith.constant dense<0.000000e+00> : vector<16x128xf32>
    %18 = tpu.matmul %1, %17, %cst_14 {dimension_numbers = #tpu.dot_dimension_numbers<[1], [0], [0], [1], [0, 0, 1, 1], [], []>} : vector<16x16xbf16>, vector<16x128xbf16>, vector<16x128xf32> -> vector<16x128xf32>
    %19 = vector.broadcast %14 : vector<1x128xf32> to vector<16x128xf32>
    %20 = arith.addf %18, %19 : vector<16x128xf32>
    %cst_15 = arith.constant 0.000000e+00 : f32
    %21 = vector.broadcast %cst_15 : f32 to vector<16x128xf32>
    %22 = arith.maximumf %20, %21 : vector<16x128xf32>
    %c0_16 = arith.constant 0 : index
    %c0_17 = arith.constant 0 : index
    %23 = vector.load %arg6[%c0_16, %c0_17] : memref<128x128xbf16, #tpu.memory_space<vmem>>, vector<128x128xbf16>
    %c0_18 = arith.constant 0 : index
    %c0_19 = arith.constant 0 : index
    %24 = vector.load %arg7[%c0_18, %c0_19] : memref<1x128xf32, #tpu.memory_space<vmem>>, vector<1x128xf32>
    %25 = arith.truncf %22 : vector<16x128xf32> to vector<16x128xbf16>
    %cst_20 = arith.constant dense<0.000000e+00> : vector<16x128xf32>
    %26 = tpu.matmul %25, %23, %cst_20 {dimension_numbers = #tpu.dot_dimension_numbers<[1], [0], [0], [1], [0, 0, 1, 1], [], []>} : vector<16x128xbf16>, vector<128x128xbf16>, vector<16x128xf32> -> vector<16x128xf32>
    %27 = vector.broadcast %24 : vector<1x128xf32> to vector<16x128xf32>
    %28 = arith.addf %26, %27 : vector<16x128xf32>
    %cst_21 = arith.constant dense<0xFF800000> : vector<16xf32>
    %29 = vector.multi_reduction <maximumf>, %28, %cst_21 [1] : vector<16x128xf32> to vector<16xf32>
    %30 = vector.shape_cast %29 : vector<16xf32> to vector<16x1xf32>
    %31 = vector.broadcast %30 : vector<16x1xf32> to vector<16x128xf32>
    %32 = arith.subf %28, %31 : vector<16x128xf32>
    %33 = math.exp %32 : vector<16x128xf32>
    %cst_22 = arith.constant dense<0.000000e+00> : vector<16xf32>
    %34 = vector.multi_reduction <add>, %33, %cst_22 [1] : vector<16x128xf32> to vector<16xf32>
    %35 = vector.shape_cast %34 : vector<16xf32> to vector<16x1xf32>
    %36 = math.log %35 : vector<16x1xf32>
    %37 = vector.broadcast %36 : vector<16x1xf32> to vector<16x128xf32>
    %38 = arith.subf %32, %37 : vector<16x128xf32>
    %c0_23 = arith.constant 0 : index
    %c0_24 = arith.constant 0 : index
    %39 = vector.load %arg8[%c0_23, %c0_24] : memref<16x128xf32, #tpu.memory_space<vmem>>, vector<16x128xf32>
    tpu.vector_store %arg8[%c0_23, %c0_24], %38 {strides = array<i32>} : memref<16x128xf32, #tpu.memory_space<vmem>>, vector<16x128xf32>,
    return
  }
}

</mosaic_0001>

<llo_original>
// kernel: a_call__.1
$region0: #{a_call__.1}
  #allocation0 [shape = 'u32[]', space=smem, size = 0x4, offset = 0x4, fixed_abs, tag = 'smem constant byte address 0x4 - core index']
  #allocation1 [shape = 'u32[144,128]{1,0:T(1,128)}', space=vmem, size = 0x12000, scoped, tag = 'internal scratch']
  %s0 = inlined_call_operand.vmem [shape: f32[16,16], index: 0, kind: input, shape index: {}]
  %s1 = inlined_call_operand.vmem [shape: f32[16,128], index: 1, kind: input, shape index: {}]
  %s2 = inlined_call_operand.hbm [shape: bf16[128,128], index: 2, kind: input, shape index: {}]
  %s3 = inlined_call_operand.vmem [shape: f32[1,128], index: 3, kind: input, shape index: {}, may-alias: {3,5}]
  %s4 = inlined_call_operand.hbm [shape: bf16[128,128], index: 4, kind: input, shape index: {}]
  %s5 = inlined_call_operand.vmem [shape: f32[1,128], index: 5, kind: input, shape index: {}, may-alias: {3,5}]
  %s6 = inlined_call_operand.vmem [shape: bf16[128,128], index: 6, kind: input, shape index: {}]
  %s7 = inlined_call_operand.vmem [shape: f32[1,128], index: 7, kind: input, shape index: {}]
  %s8 = inlined_call_operand.vmem [shape: f32[16,128], index: 8, kind: output, shape index: {}]
  %s9 = sld [smem:[#allocation0]]
  $region50: #{a_call__.1} parent=0
    _
  %s11 = ssub.s32 1, %s9
  %s12 = scalar_select 0, %s11, %s9
  $region1: #{a_call__.1} parent=0
    #allocation2 [shape = 'u8[32768]{0}', space=vmem, size = 0x8000, scoped, tag = 'input window, operand 2, single buffered']
    #allocation3 [shape = 's32[1]{0}', space=sflag, size = 0x4, scoped, tag = 'scoped memory for a_call__.1']
    #allocation4 [shape = 'u8[32768]{0}', space=vmem, size = 0x8000, scoped, tag = 'input window, operand 4, single buffered']
    #allocation5 [shape = 's32[1]{0}', space=sflag, size = 0x4, scoped, tag = 'scoped memory for a_call__.1']
    %13 = vsyncpa [#allocation3], 0
    %14 = vsyncpa [#allocation5], 0
    // Predicated region
    $region2: #{a_call__.1} parent=1 // pred_check
      _
    $region3: #{a_call__.1} parent=1 // pred_check_branch
      %16 = sbr.rel (0) target = $region5
    $region4: #{a_call__.1} parent=1 // pred_region
      _
    $region5: #{a_call__.1} parent=1 // pred_fallthru
      _
    // Predicated region
    $region6: #{a_call__.1} parent=1 // pred_check
      _
    $region7: #{a_call__.1} parent=1 // pred_check_branch
      %18 = sbr.rel (0) target = $region9
    $region8: #{a_call__.1} parent=1 // pred_region
      _
    $region9: #{a_call__.1} parent=1 // pred_fallthru
      _
    // Predicated region
    $region10: #{a_call__.1} parent=1 // pred_check
      _
    $region11: #{a_call__.1} parent=1 // pred_check_branch
      %20 = sbr.rel (0) target = $region13
    $region12: #{a_call__.1} parent=1 // pred_region
      %s22 = ssub.s32 1024, 1024
      %23 = vsyncadd [#allocation3], %s22
      %s24 = sshll.u32 [#allocation2], 4
      %s25 = int_to_ptr.vmem [resolvable:$true] %s24
      %30 = dma.hbm_to_vmem [thread:$0]  %s2, 1024, %s25, [#allocation3], 64, 64, 4
    $region13: #{a_call__.1} parent=1 // pred_fallthru
      _
    // Predicated region
    $region14: #{a_call__.1} parent=1 // pred_check
      _
    $region15: #{a_call__.1} parent=1 // pred_check_branch
      %32 = sbr.rel (0) target = $region17
    $region16: #{a_call__.1} parent=1 // pred_region
      _
    $region17: #{a_call__.1} parent=1 // pred_fallthru
      _
    // Predicated region
    $region18: #{a_call__.1} parent=1 // pred_check
      _
    $region19: #{a_call__.1} parent=1 // pred_check_branch
      %34 = sbr.rel (0) target = $region21
    $region20: #{a_call__.1} parent=1 // pred_region
      %s36 = ssub.s32 1024, 1024
      %37 = vsyncadd [#allocation5], %s36
      %s38 = sshll.u32 [#allocation4], 4
      %s39 = int_to_ptr.vmem [resolvable:$true] %s38
      %44 = dma.hbm_to_vmem [thread:$0]  %s4, 1024, %s39, [#allocation5], 64, 64, 4
    $region21: #{a_call__.1} parent=1 // pred_fallthru
      _
    // Predicated region
    $region22: #{a_call__.1} parent=1 // pred_check
      _
    $region23: #{a_call__.1} parent=1 // pred_check_branch
      %46 = sbr.rel (0) target = $region25
    $region24: #{a_call__.1} parent=1 // pred_region
      _
    $region25: #{a_call__.1} parent=1 // pred_fallthru
      _
    // Predicated region
    $region26: #{a_call__.1} parent=1 // pred_check
      _
    $region27: #{a_call__.1} parent=1 // pred_check_branch
      %48 = sbr.rel (0) target = $region29
    $region28: #{a_call__.1} parent=1 // pred_region
      _
    $region29: #{a_call__.1} parent=1 // pred_fallthru
      _
    // Predicated region
    $region30: #{a_call__.1} parent=1 // pred_check
      _
    $region31: #{a_call__.1} parent=1 // pred_check_branch
      %50 = sbr.rel (0) target = $region33
    $region32: #{a_call__.1} parent=1 // pred_region
      _
    $region33: #{a_call__.1} parent=1 // pred_fallthru
      _
    // Predicated region
    $region34: #{a_call__.1} parent=1 // pred_check
      _
    $region35: #{a_call__.1} parent=1 // pred_check_branch
      %52 = sbr.rel (0) target = $region37
    $region36: #{a_call__.1} parent=1 // pred_region
      %53 = dma.done [#allocation3], 1024
    $region37: #{a_call__.1} parent=1 // pred_fallthru
      _
    // Predicated region
    $region38: #{a_call__.1} parent=1 // pred_check
      _
    $region39: #{a_call__.1} parent=1 // pred_check_branch
      %55 = sbr.rel (0) target = $region41
    $region40: #{a_call__.1} parent=1 // pred_region
      %56 = dma.done [#allocation5], 1024
    $region41: #{a_call__.1} parent=1 // pred_fallthru
      _
    %v58 = vld [vmem:[%s0] sm:$0xff]
    %v59 = vld [vmem:[%s0 + $0x8] sm:$0xff]
    %v60 = vpack.c.bf16 %v59, %v58
    %v61 = vld [vmem:[%s1] sm:$0xff]
    %v62 = vld [vmem:[%s1 + $0x8] sm:$0xff]
    %v63 = vld [vmem:[#allocation2] sm:$0xf]
    %v64 = vld [vmem:[#allocation2 + $0x4] sm:$0xf]
    %v65 = vld [vmem:[#allocation2 + $0x8] sm:$0xf]
    %v66 = vld [vmem:[#allocation2 + $0xc] sm:$0xf]
    %v67 = vld [vmem:[#allocation2 + $0x10] sm:$0xf]
    %v68 = vld [vmem:[#allocation2 + $0x14] sm:$0xf]
    %v69 = vld [vmem:[#allocation2 + $0x18] sm:$0xf]
    %v70 = vld [vmem:[#allocation2 + $0x1c] sm:$0xf]
    %v71 = vld [vmem:[#allocation2 + $0x20] sm:$0xf]
    %v72 = vld [vmem:[#allocation2 + $0x24] sm:$0xf]
    %v73 = vld [vmem:[#allocation2 + $0x28] sm:$0xf]
    %v74 = vld [vmem:[#allocation2 + $0x2c] sm:$0xf]
    %v75 = vld [vmem:[#allocation2 + $0x30] sm:$0xf]
    %v76 = vld [vmem:[#allocation2 + $0x34] sm:$0xf]
    %v77 = vld [vmem:[#allocation2 + $0x38] sm:$0xf]
    %v78 = vld [vmem:[#allocation2 + $0x3c] sm:$0xf]
    %v79 = vld [vmem:[%s3] sm:$0x1]
    %v80 = vpack.c.bf16 %v62, %v61
    %v97 = vunpack.c.l.b16 %v63
    %v98 = vunpack.c.l.b16 %v64
    %v99 = vunpack.c.l.b16 %v65
    %v100 = vunpack.c.l.b16 %v66
    %v101 = vunpack.c.l.b16 %v67
    %v102 = vunpack.c.l.b16 %v68
    %v103 = vunpack.c.l.b16 %v69
    %v104 = vunpack.c.l.b16 %v70
    %v105 = vunpack.c.l.b16 %v71
    %v106 = vunpack.c.l.b16 %v72
    %v107 = vunpack.c.l.b16 %v73
    %v108 = vunpack.c.l.b16 %v74
    %v109 = vunpack.c.l.b16 %v75
    %v110 = vunpack.c.l.b16 %v76
    %v111 = vunpack.c.l.b16 %v77
    %v112 = vunpack.c.l.b16 %v78
    %v113 = vpack.c.b16 %v98, %v97
    %v114 = vpack.c.b16 %v100, %v99
    %v115 = vpack.c.b16 %v102, %v101
    %v116 = vpack.c.b16 %v104, %v103
    %v117 = vpack.c.b16 %v106, %v105
    %v118 = vpack.c.b16 %v108, %v107
    %v119 = vpack.c.b16 %v110, %v109
    %v120 = vpack.c.b16 %v112, %v111
    %129 = vmatprep.subr.bf16.mxu0 0
    %130 = vmatpush1.bf16.msra.mxu0 %v113
    %131 = vmatprep.subr.bf16.mxu0 0
    %132 = vmatpush1.bf16.msra.mxu0 %v114
    %133 = vmatprep.subr.bf16.mxu0 0
    %134 = vmatpush1.bf16.msra.mxu0 %v115
    %135 = vmatprep.subr.bf16.mxu0 0
    %136 = vmatpush1.bf16.msra.mxu0 %v116
    %137 = vmatprep.subr.bf16.mxu0 0
    %138 = vmatpush1.bf16.msra.mxu0 %v117
    %139 = vmatprep.subr.bf16.mxu0 0
    %140 = vmatpush1.bf16.msra.mxu0 %v118
    %141 = vmatprep.subr.bf16.mxu0 0
    %142 = vmatpush1.bf16.msra.mxu0 %v119
    %143 = vmatprep.subr.bf16.mxu0 0
    %144 = vmatpush1.bf16.msra.mxu0 %v120
    %145 = vmatprep.subr.bf16.mxu0 0
    %146 = vmatpush1.bf16.msra.mxu0 0
    %147 = vmatprep.subr.bf16.mxu0 0
    %148 = vmatpush1.bf16.msra.mxu0 0
    %149 = vmatprep.subr.bf16.mxu0 0
    %150 = vmatpush1.bf16.msra.mxu0 0
    %151 = vmatprep.subr.bf16.mxu0 0
    %152 = vmatpush1.bf16.msra.mxu0 0
    %153 = vmatprep.subr.bf16.mxu0 0
    %154 = vmatpush1.bf16.msra.mxu0 0
    %155 = vmatprep.subr.bf16.mxu0 0
    %156 = vmatpush1.bf16.msra.mxu0 0
    %157 = vmatprep.subr.bf16.mxu0 0
    %158 = vmatpush1.bf16.msra.mxu0 0
    %159 = vmatprep.subr.bf16.mxu0 0
    %160 = vmatpush1.bf16.msra.mxu0 0
    %161 = vmatprep.mubr.bf16.mxu0 0
    %162 = vmatmul.mubr.bf16.gmra.mrb[0].mxu0 %v80
    %v163 = vpop.f32.mrb[0].mxu0
    %v164 = vadd.f32 0.0, %v163
    %v165 = vpop.f32.mrb[0].mxu0
    %v166 = vpop.f32.mrb[0].mxu0
    %v167 = vadd.f32 0.0, %v166
    %v168 = vpop.f32.mrb[0].mxu0
    %169 = vdwg.mxu0
    %v170 = vpack.c.bf16 %v167, %v164
    %v172 = vlaneseq
    %v173 = vshrl.u32 %v172, 7
    %v174 = vsub.s32 0, %v173
    %v175 = vrot.slane %v79, %v174
    %vm177 = vcmask 130048
    %v179 = vsel %vm177, %v60, 0
    %181 = vmatprep.subr.bf16.mxu0 0
    %182 = vmatpush1.bf16.msra.mxu0 %v170
    %183 = vmatprep.subr.bf16.mxu0 0
    %184 = vmatpush1.bf16.msra.mxu0 0
    %185 = vmatprep.subr.bf16.mxu0 0
    %186 = vmatpush1.bf16.msra.mxu0 0
    %187 = vmatprep.subr.bf16.mxu0 0
    %188 = vmatpush1.bf16.msra.mxu0 0
    %189 = vmatprep.subr.bf16.mxu0 0
    %190 = vmatpush1.bf16.msra.mxu0 0
    %191 = vmatprep.subr.bf16.mxu0 0
    %192 = vmatpush1.bf16.msra.mxu0 0
    %193 = vmatprep.subr.bf16.mxu0 0
    %194 = vmatpush1.bf16.msra.mxu0 0
    %195 = vmatprep.subr.bf16.mxu0 0
    %196 = vmatpush1.bf16.msra.mxu0 0
    %197 = vmatprep.subr.bf16.mxu0 0
    %198 = vmatpush1.bf16.msra.mxu0 0
    %199 = vmatprep.subr.bf16.mxu0 0
    %200 = vmatpush1.bf16.msra.mxu0 0
    %201 = vmatprep.subr.bf16.mxu0 0
    %202 = vmatpush1.bf16.msra.mxu0 0
    %203 = vmatprep.subr.bf16.mxu0 0
    %204 = vmatpush1.bf16.msra.mxu0 0
    %205 = vmatprep.subr.bf16.mxu0 0
    %206 = vmatpush1.bf16.msra.mxu0 0
    %207 = vmatprep.subr.bf16.mxu0 0
    %208 = vmatpush1.bf16.msra.mxu0 0
    %209 = vmatprep.subr.bf16.mxu0 0
    %210 = vmatpush1.bf16.msra.mxu0 0
    %211 = vmatprep.subr.bf16.mxu0 0
    %212 = vmatpush1.bf16.msra.mxu0 0
    %213 = vmatprep.mubr.bf16.mxu0 0
    %214 = vmatmul.mubr.bf16.gmra.mrb[0].mxu0 %v179
    %v215 = vpop.f32.mrb[0].mxu0
    %v216 = vadd.f32 %v175, %v215
    %v217 = vpop.f32.mrb[0].mxu0
    %v218 = vpop.f32.mrb[0].mxu0
    %v219 = vadd.f32 %v175, %v218
    %v220 = vpop.f32.mrb[0].mxu0
    %221 = vdwg.mxu0
    %v222 = vmax.f32 %v216, 0.0
    %v223 = vmax.f32 %v219, 0.0
    %v224 = vld [vmem:[#allocation4] sm:$0xf]
    %v225 = vld [vmem:[#allocation4 + $0x4] sm:$0xf]
    %v226 = vld [vmem:[#allocation4 + $0x8] sm:$0xf]
    %v227 = vld [vmem:[#allocation4 + $0xc] sm:$0xf]
    %v228 = vld [vmem:[#allocation4 + $0x10] sm:$0xf]
    %v229 = vld [vmem:[#allocation4 + $0x14] sm:$0xf]
    %v230 = vld [vmem:[#allocation4 + $0x18] sm:$0xf]
    %v231 = vld [vmem:[#allocation4 + $0x1c] sm:$0xf]
    %v232 = vld [vmem:[#allocation4 + $0x20] sm:$0xf]
    %v233 = vld [vmem:[#allocation4 + $0x24] sm:$0xf]
    %v234 = vld [vmem:[#allocation4 + $0x28] sm:$0xf]
    %v235 = vld [vmem:[#allocation4 + $0x2c] sm:$0xf]
    %v236 = vld [vmem:[#allocation4 + $0x30] sm:$0xf]
    %v237 = vld [vmem:[#allocation4 + $0x34] sm:$0xf]
    %v238 = vld [vmem:[#allocation4 + $0x38] sm:$0xf]
    %v239 = vld [vmem:[#allocation4 + $0x3c] sm:$0xf]
    %v240 = vld [vmem:[%s5] sm:$0x1]
    %v241 = vpack.c.bf16 %v223, %v222
    %v258 = vunpack.c.l.b16 %v224
    %v259 = vunpack.c.l.b16 %v225
    %v260 = vunpack.c.l.b16 %v226
    %v261 = vunpack.c.l.b16 %v227
    %v262 = vunpack.c.l.b16 %v228
    %v263 = vunpack.c.l.b16 %v229
    %v264 = vunpack.c.l.b16 %v230
    %v265 = vunpack.c.l.b16 %v231
    %v266 = vunpack.c.l.b16 %v232
    %v267 = vunpack.c.l.b16 %v233
    %v268 = vunpack.c.l.b16 %v234
    %v269 = vunpack.c.l.b16 %v235
    %v270 = vunpack.c.l.b16 %v236
    %v271 = vunpack.c.l.b16 %v237
    %v272 = vunpack.c.l.b16 %v238
    %v273 = vunpack.c.l.b16 %v239
    %v274 = vpack.c.b16 %v259, %v258
    %v275 = vpack.c.b16 %v261, %v260
    %v276 = vpack.c.b16 %v263, %v262
    %v277 = vpack.c.b16 %v265, %v264
    %v278 = vpack.c.b16 %v267, %v266
    %v279 = vpack.c.b16 %v269, %v268
    %v280 = vpack.c.b16 %v271, %v270
    %v281 = vpack.c.b16 %v273, %v272
    %290 = vmatprep.subr.bf16.mxu0 0
    %291 = vmatpush1.bf16.msra.mxu0 %v274
    %292 = vmatprep.subr.bf16.mxu0 0
    %293 = vmatpush1.bf16.msra.mxu0 %v275
    %294 = vmatprep.subr.bf16.mxu0 0
    %295 = vmatpush1.bf16.msra.mxu0 %v276
    %296 = vmatprep.subr.bf16.mxu0 0
    %297 = vmatpush1.bf16.msra.mxu0 %v277
    %298 = vmatprep.subr.bf16.mxu0 0
    %299 = vmatpush1.bf16.msra.mxu0 %v278
    %300 = vmatprep.subr.bf16.mxu0 0
    %301 = vmatpush1.bf16.msra.mxu0 %v279
    %302 = vmatprep.subr.bf16.mxu0 0
    %303 = vmatpush1.bf16.msra.mxu0 %v280
    %304 = vmatprep.subr.bf16.mxu0 0
    %305 = vmatpush1.bf16.msra.mxu0 %v281
    %306 = vmatprep.subr.bf16.mxu0 0
    %307 = vmatpush1.bf16.msra.mxu0 0
    %308 = vmatprep.subr.bf16.mxu0 0
    %309 = vmatpush1.bf16.msra.mxu0 0
    %310 = vmatprep.subr.bf16.mxu0 0
    %311 = vmatpush1.bf16.msra.mxu0 0
    %312 = vmatprep.subr.bf16.mxu0 0
    %313 = vmatpush1.bf16.msra.mxu0 0
    %314 = vmatprep.subr.bf16.mxu0 0
    %315 = vmatpush1.bf16.msra.mxu0 0
    %316 = vmatprep.subr.bf16.mxu0 0
    %317 = vmatpush1.bf16.msra.mxu0 0
    %318 = vmatprep.subr.bf16.mxu0 0
    %319 = vmatpush1.bf16.msra.mxu0 0
    %320 = vmatprep.subr.bf16.mxu0 0
    %321 = vmatpush1.bf16.msra.mxu0 0
    %322 = vmatprep.mubr.bf16.mxu0 0
    %323 = vmatmul.mubr.bf16.gmra.mrb[0].mxu0 %v241
    %v324 = vpop.f32.mrb[0].mxu0
    %v325 = vadd.f32 0.0, %v324
    %v326 = vpop.f32.mrb[0].mxu0
    %v327 = vpop.f32.mrb[0].mxu0
    %v328 = vadd.f32 0.0, %v327
    %v329 = vpop.f32.mrb[0].mxu0
    %330 = vdwg.mxu0
    %v331 = vpack.c.bf16 %v328, %v325
    %v333 = vlaneseq
    %v334 = vshrl.u32 %v333, 7
    %v335 = vsub.s32 0, %v334
    %v336 = vrot.slane %v240, %v335
    %338 = vmatprep.subr.bf16.mxu0 0
    %339 = vmatpush1.bf16.msra.mxu0 %v331
    %340 = vmatprep.subr.bf16.mxu0 0
    %341 = vmatpush1.bf16.msra.mxu0 0
    %342 = vmatprep.subr.bf16.mxu0 0
    %343 = vmatpush1.bf16.msra.mxu0 0
    %344 = vmatprep.subr.bf16.mxu0 0
    %345 = vmatpush1.bf16.msra.mxu0 0
    %346 = vmatprep.subr.bf16.mxu0 0
    %347 = vmatpush1.bf16.msra.mxu0 0
    %348 = vmatprep.subr.bf16.mxu0 0
    %349 = vmatpush1.bf16.msra.mxu0 0
    %350 = vmatprep.subr.bf16.mxu0 0
    %351 = vmatpush1.bf16.msra.mxu0 0
    %352 = vmatprep.subr.bf16.mxu0 0
    %353 = vmatpush1.bf16.msra.mxu0 0
    %354 = vmatprep.subr.bf16.mxu0 0
    %355 = vmatpush1.bf16.msra.mxu0 0
    %356 = vmatprep.subr.bf16.mxu0 0
    %357 = vmatpush1.bf16.msra.mxu0 0
    %358 = vmatprep.subr.bf16.mxu0 0
    %359 = vmatpush1.bf16.msra.mxu0 0
    %360 = vmatprep.subr.bf16.mxu0 0
    %361 = vmatpush1.bf16.msra.mxu0 0
    %362 = vmatprep.subr.bf16.mxu0 0
    %363 = vmatpush1.bf16.msra.mxu0 0
    %364 = vmatprep.subr.bf16.mxu0 0
    %365 = vmatpush1.bf16.msra.mxu0 0
    %366 = vmatprep.subr.bf16.mxu0 0
    %367 = vmatpush1.bf16.msra.mxu0 0
    %368 = vmatprep.subr.bf16.mxu0 0
    %369 = vmatpush1.bf16.msra.mxu0 0
    %370 = vmatprep.mubr.bf16.mxu0 0
    %371 = vmatmul.mubr.bf16.gmra.mrb[0].mxu0 %v179
    %v372 = vpop.f32.mrb[0].mxu0
    %v373 = vadd.f32 %v336, %v372
    %v374 = vpop.f32.mrb[0].mxu0
    %v375 = vpop.f32.mrb[0].mxu0
    %v376 = vadd.f32 %v336, %v375
    %v377 = vpop.f32.mrb[0].mxu0
    %378 = vdwg.mxu0
    %v379 = vmax.f32 %v373, 0.0
    %v380 = vmax.f32 %v376, 0.0
    %v381 = vld [vmem:[%s6] sm:$0xf]
    %v382 = vld [vmem:[%s6 + $0x4] sm:$0xf]
    %v383 = vld [vmem:[%s6 + $0x8] sm:$0xf]
    %v384 = vld [vmem:[%s6 + $0xc] sm:$0xf]
    %v385 = vld [vmem:[%s6 + $0x10] sm:$0xf]
    %v386 = vld [vmem:[%s6 + $0x14] sm:$0xf]
    %v387 = vld [vmem:[%s6 + $0x18] sm:$0xf]
    %v388 = vld [vmem:[%s6 + $0x1c] sm:$0xf]
    %v389 = vld [vmem:[%s6 + $0x20] sm:$0xf]
    %v390 = vld [vmem:[%s6 + $0x24] sm:$0xf]
    %v391 = vld [vmem:[%s6 + $0x28] sm:$0xf]
    %v392 = vld [vmem:[%s6 + $0x2c] sm:$0xf]
    %v393 = vld [vmem:[%s6 + $0x30] sm:$0xf]
    %v394 = vld [vmem:[%s6 + $0x34] sm:$0xf]
    %v395 = vld [vmem:[%s6 + $0x38] sm:$0xf]
    %v396 = vld [vmem:[%s6 + $0x3c] sm:$0xf]
    %v397 = vld [vmem:[%s7] sm:$0x1]
    %v398 = vpack.c.bf16 %v380, %v379
    %v400 = vlaneseq
    %v401 = vshrl.u32 %v400, 7
    %v402 = vsub.s32 0, %v401
    %v403 = vrot.slane %v397, %v402
    %v421 = vunpack.c.l.b16 %v381
    %v422 = vunpack.c.l.b16 %v382
    %v423 = vunpack.c.l.b16 %v383
    %v424 = vunpack.c.l.b16 %v384
    %v425 = vunpack.c.l.b16 %v385
    %v426 = vunpack.c.l.b16 %v386
    %v427 = vunpack.c.l.b16 %v387
    %v428 = vunpack.c.l.b16 %v388
    %v429 = vunpack.c.l.b16 %v389
    %v430 = vunpack.c.l.b16 %v390
    %v431 = vunpack.c.l.b16 %v391
    %v432 = vunpack.c.l.b16 %v392
    %v433 = vunpack.c.l.b16 %v393
    %v434 = vunpack.c.l.b16 %v394
    %v435 = vunpack.c.l.b16 %v395
    %v436 = vunpack.c.l.b16 %v396
    %v437 = vpack.c.b16 %v422, %v421
    %v438 = vpack.c.b16 %v424, %v423
    %v439 = vpack.c.b16 %v426, %v425
    %v440 = vpack.c.b16 %v428, %v427
    %v441 = vpack.c.b16 %v430, %v429
    %v442 = vpack.c.b16 %v432, %v431
    %v443 = vpack.c.b16 %v434, %v433
    %v444 = vpack.c.b16 %v436, %v435
    %453 = vmatprep.subr.bf16.mxu0 0
    %454 = vmatpush1.bf16.msra.mxu0 %v437
    %455 = vmatprep.subr.bf16.mxu0 0
    %456 = vmatpush1.bf16.msra.mxu0 %v438
    %457 = vmatprep.subr.bf16.mxu0 0
    %458 = vmatpush1.bf16.msra.mxu0 %v439
    %459 = vmatprep.subr.bf16.mxu0 0
    %460 = vmatpush1.bf16.msra.mxu0 %v440
    %461 = vmatprep.subr.bf16.mxu0 0
    %462 = vmatpush1.bf16.msra.mxu0 %v441
    %463 = vmatprep.subr.bf16.mxu0 0
    %464 = vmatpush1.bf16.msra.mxu0 %v442
    %465 = vmatprep.subr.bf16.mxu0 0
    %466 = vmatpush1.bf16.msra.mxu0 %v443
    %467 = vmatprep.subr.bf16.mxu0 0
    %468 = vmatpush1.bf16.msra.mxu0 %v444
    %469 = vmatprep.subr.bf16.mxu0 0
    %470 = vmatpush1.bf16.msra.mxu0 0
    %471 = vmatprep.subr.bf16.mxu0 0
    %472 = vmatpush1.bf16.msra.mxu0 0
    %473 = vmatprep.subr.bf16.mxu0 0
    %474 = vmatpush1.bf16.msra.mxu0 0
    %475 = vmatprep.subr.bf16.mxu0 0
    %476 = vmatpush1.bf16.msra.mxu0 0
    %477 = vmatprep.subr.bf16.mxu0 0
    %478 = vmatpush1.bf16.msra.mxu0 0
    %479 = vmatprep.subr.bf16.mxu0 0
    %480 = vmatpush1.bf16.msra.mxu0 0
    %481 = vmatprep.subr.bf16.mxu0 0
    %482 = vmatpush1.bf16.msra.mxu0 0
    %483 = vmatprep.subr.bf16.mxu0 0
    %484 = vmatpush1.bf16.msra.mxu0 0
    %485 = vmatprep.mubr.bf16.mxu0 0
    %486 = vmatmul.mubr.bf16.gmra.mrb[0].mxu0 %v398
    %v487 = vpop.f32.mrb[0].mxu0
    %v488 = vadd.f32 %v403, %v487
    %v489 = vpop.f32.mrb[0].mxu0
    %v490 = vpop.f32.mrb[0].mxu0
    %v491 = vadd.f32 %v403, %v490
    %v492 = vpop.f32.mrb[0].mxu0
    %493 = vdwg.mxu0
    %494 = vmax.xlane.f32.xlu0 %v488
    %v495 = vpop.xlane.xlu0 %494
    %496 = vmax.xlane.f32.xlu0 %v491
    %v497 = vpop.xlane.xlu0 %496
    %v498 = vsub.f32 %v488, %v495
    %v499 = vsub.f32 %v491, %v497
    %v500 = vmul.f32 %v498, 1.442695
    %v501 = vpow.pop %v500
    %v502 = vmul.f32 %v499, 1.442695
    %v503 = vpow.pop %v502
    %504 = vadd.xlane.f32.xlu0 %v501
    %v505 = vpop.xlane.xlu0 %504
    %506 = vadd.xlane.f32.xlu0 %v503
    %v507 = vpop.xlane.xlu0 %506
    %v508 = vlog2.pop %v505
    %v509 = vmul.f32 %v508, 0.6931472
    %v510 = vlog2.pop %v507
    %v511 = vmul.f32 %v510, 0.6931472
    %v512 = vsub.f32 %v498, %v509
    %v513 = vsub.f32 %v499, %v511
    %514 = vst [vmem:[%s8] sm:$0xff] %v512
    %515 = vst [vmem:[%s8 + $0x8] sm:$0xff] %v513
    // Predicated region
    $region42: #{a_call__.1} parent=1 // pred_check
      _
    $region43: #{a_call__.1} parent=1 // pred_check_branch
      %517 = sbr.rel (0) target = $region45
    $region44: #{a_call__.1} parent=1 // pred_region
      _
    $region45: #{a_call__.1} parent=1 // pred_fallthru
      _
    // Predicated region
    $region46: #{a_call__.1} parent=1 // pred_check
      _
    $region47: #{a_call__.1} parent=1 // pred_check_branch
      %519 = sbr.rel (0) target = $region49
    $region48: #{a_call__.1} parent=1 // pred_region
      _
    $region49: #{a_call__.1} parent=1 // pred_fallthru
      _
    %520 = vsyncpa [#allocation3], 1
    %521 = vsyncpa [#allocation5], 1

</llo_original>
